<compile_context>
chip_gen: v5e
topology: v5e:2x2
jax: 0.10.0
libtpu: 0.0.40
codegen_flags: <defaults>
</compile_context>

<pallas_src>
import math
import functools

import jax
import jax.numpy as jnp
from jax import lax
from jax.experimental import pallas as pl
from jax.experimental.pallas import tpu as pltpu

_MIB = 1 << 20


# --------------------------------------------------------------------------- #
# Kernel
# --------------------------------------------------------------------------- #
def _pe_add_kernel(x_ref, pe_ref, o_ref, *, bt: int, d: int, lane_chunk: int):
    """One (seq_tile, bt*d) tile: out = x + pe broadcast over the batch axis.

    x_ref / o_ref : (seq_tile, bt*d) lane-dense tiles
    pe_ref        : (seq_tile, d)    matching positional-encoding tile
    lane_chunk    : batches per add-chunk; lane_chunk*d is a multiple of 128
                    (or lane_chunk == 1 when d itself is a multiple of 128),
                    so every full chunk is an unmasked 128-lane-aligned store.
    """
    pe = pe_ref[...]
    cd = lane_chunk * d
    n_full = bt // lane_chunk
    tail = bt - n_full * lane_chunk

    if n_full > 0:
        pe_full = pe if lane_chunk == 1 else jnp.concatenate(
            [pe] * lane_chunk, axis=-1)
        if n_full == 1 and tail == 0:
            o_ref[...] = x_ref[...] + pe_full
        elif n_full <= 16:
            # Short static unroll: LLO scheduler sees everything.
            for c in range(n_full):
                sl = slice(c * cd, (c + 1) * cd)
                o_ref[:, sl] = x_ref[:, sl] + pe_full
        else:
            def body(c, carry):
                off = pl.multiple_of(c * cd, 128)
                o_ref[:, pl.ds(off, cd)] = x_ref[:, pl.ds(off, cd)] + pe_full
                return carry
            lax.fori_loop(0, n_full, body, 0)

    if tail > 0:
        pe_tail = pe if tail == 1 else jnp.concatenate([pe] * tail, axis=-1)
        o_ref[:, n_full * cd:] = x_ref[:, n_full * cd:] + pe_tail


# --------------------------------------------------------------------------- #
# Tiling heuristics
# --------------------------------------------------------------------------- #
def _sublane_rows(itemsize: int) -> int:
    # f32 -> 8, bf16/fp16 -> 16, int8/fp8 -> 32 (sublane packing).
    return max(8, 32 // max(1, itemsize))


def _vmem_capacity_bytes() -> int:
    try:
        return int(pltpu.get_tpu_info().vmem_capacity_bytes)
    except Exception:
        return 64 * _MIB        # conservative (v7x per-TensorCore VMEM)


def _choose_tiles(S: int, B: int, D: int, itemsize: int, target_bytes: int):
    """Pick (seq_tile, batch_tile) giving ~target_bytes of x per block."""
    sub = _sublane_rows(itemsize)
    row_bytes = D * itemsize
    min_seq = S if S < sub else sub

    # Smallest batch-chunk whose lane width is a multiple of 128.
    bt_step = 1 if D % 128 == 0 else (128 // math.gcd(D, 128))

    bt_max = max(1, target_bytes // max(1, min_seq * row_bytes))
    if bt_max >= B:
        bt = B                                   # one lane block (full width)
    else:
        bt = (bt_max // bt_step) * bt_step
        if bt <= 0:
            bt = min(B, bt_step)
        bt = min(bt, B)
        if bt < B:
            # Prefer a bt dividing B (clean last block) without shrinking >2x.
            floor = max(bt // 2, bt_step)
            for cand in range(bt, floor - 1, -bt_step):
                if B % cand == 0:
                    bt = cand
                    break
            if (bt * D) % 128 != 0:              # safety net
                bt = B

    if S <= sub:
        seq_tile = S                             # full seq dim (always legal)
    else:
        st = max(sub, target_bytes // max(1, bt * row_bytes))
        st = min(st, S)
        seq_tile = max(sub, (st // sub) * sub)

    # Keep >= 2 grid steps when there is enough work (v7x has 2 TCs).
    steps = pl.cdiv(S, seq_tile) * pl.cdiv(B, bt)
    if steps == 1 and S > sub and S * B * D * itemsize >= _MIB:
        half = -(-((S + 1) // 2) // sub) * sub
        seq_tile = min(seq_tile, max(sub, half))

    return seq_tile, bt, bt_step


# --------------------------------------------------------------------------- #
# pallas_call wrapper
# --------------------------------------------------------------------------- #
@functools.partial(
    jax.jit,
    static_argnames=("seq_tile", "bt", "lane_chunk", "vmem_limit", "donate"))
def _pe_add_call(x2, pe2, *, seq_tile, bt, lane_chunk, vmem_limit, donate):
    S, BD = x2.shape
    D = pe2.shape[1]
    grid = (pl.cdiv(S, seq_tile), pl.cdiv(BD, bt * D))

    kernel = functools.partial(_pe_add_kernel, bt=bt, d=D, lane_chunk=lane_chunk)
    return pl.pallas_call(
        kernel,
        out_shape=jax.ShapeDtypeStruct((S, BD), x2.dtype),
        grid_spec=pltpu.PrefetchScalarGridSpec(
            num_scalar_prefetch=0,
            grid=grid,
            in_specs=[
                pl.BlockSpec((seq_tile, bt * D), lambda i, j: (i, j)),
                # pe tile depends only on the seq block; lane axis is the
                # innermost grid axis, so Pallas re-fetches pe only when the
                # seq block changes (pe HBM traffic ~ S*D total).
                pl.BlockSpec((seq_tile, D), lambda i, j: (i, 0)),
            ],
            out_specs=pl.BlockSpec((seq_tile, bt * D), lambda i, j: (i, j)),
        ),
        compiler_params=pltpu.CompilerParams(
            dimension_semantics=("parallel", "parallel"),
            vmem_limit_bytes=vmem_limit,
        ),
        input_output_aliases=({0: 0} if donate else {}),
    )(x2, pe2)


def positional_encoding_forward(x, pe, *, seq_tile=None, batch_tile=None,
                                target_block_bytes=4 * _MIB, donate_x=False):
    """x: [S, B, D]; pe: [max_len, 1, D] (or [max_len, D]).

    Returns x + pe[:S] (dropout = identity / eval mode).
    """
    S, B, D = x.shape
    pe2 = pe[:, 0, :] if pe.ndim == 3 else pe
    assert pe2.shape[0] >= S and pe2.shape[1] == D

    # Slice BEFORE casting: only the S rows actually used get touched/cast.
    pe2 = pe2[:S]
    if pe2.dtype != x.dtype:
        # NOTE: for bf16/fp16 x the add is done in x.dtype, whereas PyTorch
        # promotes to f32; tiny numeric deviation, kept for HBM-traffic reasons.
        pe2 = pe2.astype(x.dtype)

    # Lane-dense 2-D view (contiguous reshape -> free in XLA).
    x2 = x.reshape(S, B * D)

    itemsize = jnp.dtype(x.dtype).itemsize
    auto_seq, auto_bt, bt_step = _choose_tiles(S, B, D, itemsize,
                                               target_block_bytes)
    st = auto_seq if seq_tile is None else max(1, min(int(seq_tile), S))
    bt = auto_bt if batch_tile is None else max(1, min(int(batch_tile), B))

    # In-kernel chunk granularity (128-lane aligned unless D % 128 == 0).
    lane_chunk = 1 if D % 128 == 0 else bt_step

    # VMEM budget: double-buffered x + out, pe, plus small pe replica temp.
    x_block = st * bt * D * itemsize
    pe_block = st * D * itemsize
    pe_temp = 2 * st * min(lane_chunk, bt) * D * itemsize
    needed = 4 * x_block + 2 * pe_block + pe_temp + 2 * _MIB
    vmem_cap = _vmem_capacity_bytes()
    vmem_limit = int(min(max(needed, 32 * _MIB),
                         max(needed, vmem_cap - 16 * _MIB)))

    out2 = _pe_add_call(x2, pe2, seq_tile=st, bt=bt, lane_chunk=lane_chunk,
                        vmem_limit=vmem_limit, donate=bool(donate_x))
    return out2.reshape(S, B, D)


# --------------------------------------------------------------------------- #
# PE buffer construction (matches the PyTorch __init__)
# --------------------------------------------------------------------------- #
def make_positional_encoding_buffer(d_model: int, max_len: int = 5000):
    position = jnp.arange(max_len, dtype=jnp.float32)[:, None]          # [L,1]
    div_term = jnp.exp(
        jnp.arange(0, d_model, 2, dtype=jnp.float32)
        * (-math.log(10000.0) / d_model))                               # [D/2]
    angles = position * div_term                                        # [L,D/2]
    pe = jnp.zeros((max_len, 1, d_model), dtype=jnp.float32)
    pe = pe.at[:, 0, 0::2].set(jnp.sin(angles))
    pe = pe.at[:, 0, 1::2].set(jnp.cos(angles))
    return pe


if __name__ == "__main__":
    # --- Test 1: module-consistent small shapes (f32, d_model=32) ---
    d_model, max_len, seq_len, batch = 32, 64, 8, 2
    key = jax.random.PRNGKey(0)
    x = jax.random.normal(key, (seq_len, batch, d_model), dtype=jnp.float32)
    pe = make_positional_encoding_buffer(d_model, max_len)

    out = jax.block_until_ready(positional_encoding_forward(x, pe))
    ref = x + pe[:seq_len]
    assert out.shape == (seq_len, batch, d_model)
    assert jnp.allclose(out, ref, atol=1e-6, rtol=1e-6)

    # --- Test 2: exercise lane tiling + 128-lane chunked path (bf16) ---
    d2, s2, b2, ml2 = 128, 24, 4, 32
    x_b = jax.random.normal(jax.random.PRNGKey(0), (s2, b2, d2),
                            dtype=jnp.float32).astype(jnp.bfloat16)
    pe_b = make_positional_encoding_buffer(d2, ml2)
    out_b = jax.block_until_ready(
        positional_encoding_forward(x_b, pe_b, seq_tile=8, batch_tile=2))
    ref_b = x_b + pe_b[:s2].astype(jnp.bfloat16)
    assert out_b.shape == (s2, b2, d2)
    assert jnp.allclose(out_b.astype(jnp.float32), ref_b.astype(jnp.float32),
                        atol=1e-6, rtol=1e-6)

    print("KERNEL_OK")
</pallas_src>

<mosaic_0001>
module attributes {stable_mosaic.version = 11 : i64} {
  func.func @_pe_add_kernel(%arg0: i32, %arg1: i32, %arg2: memref<8x64xf32, #tpu.memory_space<vmem>>, %arg3: memref<8x32xf32, #tpu.memory_space<vmem>>, %arg4: memref<8x64xf32, #tpu.memory_space<vmem>>) attributes {dimension_semantics = [#tpu.dimension_semantics<parallel>, #tpu.dimension_semantics<parallel>], iteration_bounds = array<i64: 1, 1>, scalar_prefetch = 0 : i64, scratch_operands = 0 : i64, tpu.core_type = #tpu.core_type<tc>, window_params = [{transform_indices = @transform_0, window_bounds = array<i64: 8, 64>}, {transform_indices = @transform_1, window_bounds = array<i64: 8, 32>}, {transform_indices = @transform_2, window_bounds = array<i64: 8, 64>}]} {
    %c0 = arith.constant 0 : index
    %c0_0 = arith.constant 0 : index
    %0 = vector.load %arg3[%c0, %c0_0] : memref<8x32xf32, #tpu.memory_space<vmem>>, vector<8x32xf32>
    %1 = tpu.concatenate %0, %0 in 1 : vector<8x32xf32>, vector<8x32xf32> -> vector<8x64xf32>
    %c0_1 = arith.constant 0 : index
    %c0_2 = arith.constant 0 : index
    %2 = vector.load %arg2[%c0_1, %c0_2] : memref<8x64xf32, #tpu.memory_space<vmem>>, vector<8x64xf32>
    %3 = arith.addf %2, %1 : vector<8x64xf32>
    %c0_3 = arith.constant 0 : index
    %c0_4 = arith.constant 0 : index
    %4 = vector.load %arg4[%c0_3, %c0_4] : memref<8x64xf32, #tpu.memory_space<vmem>>, vector<8x64xf32>
    tpu.vector_store %arg4[%c0_3, %c0_4], %3 {strides = array<i32>} : memref<8x64xf32, #tpu.memory_space<vmem>>, vector<8x64xf32>,
    return
  }
  func.func @transform_0(%arg0: i32, %arg1: i32) -> (i32, i32) {
    %c0_i32 = arith.constant 0 : i32
    return %arg0, %arg1 : i32, i32
  }
  func.func @transform_1(%arg0: i32, %arg1: i32) -> (i32, i32) {
    %c0_i32 = arith.constant 0 : i32
    %c0_i32_0 = arith.constant 0 : i32
    return %arg0, %c0_i32 : i32, i32
  }
  func.func @transform_2(%arg0: i32, %arg1: i32) -> (i32, i32) {
    %c0_i32 = arith.constant 0 : i32
    return %arg0, %arg1 : i32, i32
  }
}

</mosaic_0001>

<llo_original>
// kernel: _pe_add_call.1
$region0: #{_pe_add_call.1}
  #allocation0 [shape = 'u32[]', space=smem, size = 0x4, offset = 0x4, fixed_abs, tag = 'smem constant byte address 0x4 - core index']
  #allocation1 [shape = 'u32[72,128]{1,0:T(1,128)}', space=vmem, size = 0x9000, scoped, tag = 'internal scratch']
  %s0 = inlined_call_operand.hbm [shape: f32[8,64], index: 0, kind: input, shape index: {}]
  %s1 = inlined_call_operand.hbm [shape: f32[8,32], index: 1, kind: input, shape index: {}]
  %s2 = inlined_call_operand.hbm [shape: f32[8,64], index: 2, kind: output, shape index: {}]
  %s3 = sld [smem:[#allocation0]]
  $region26: #{_pe_add_call.1} parent=0
    _
  %s5 = ssub.s32 1, %s3
  %s6 = scalar_select 0, %s5, %s3
  $region1: #{_pe_add_call.1} parent=0
    #allocation2 [shape = 'u8[4096]{0}', space=vmem, size = 0x1000, scoped, tag = 'input window, operand 0, single buffered']
    #allocation3 [shape = 's32[1]{0}', space=sflag, size = 0x4, scoped, tag = 'scoped memory for _pe_add_call.1']
    #allocation4 [shape = 's32[1]{0}', space=sflag, size = 0x4, scoped, tag = 'scoped memory for _pe_add_call.1']
    #allocation5 [shape = 'u8[4096]{0}', space=vmem, size = 0x1000, scoped, tag = 'input window, operand 1, single buffered']
    #allocation6 [shape = 's32[1]{0}', space=sflag, size = 0x4, scoped, tag = 'scoped memory for _pe_add_call.1']
    #allocation7 [shape = 'u8[4096]{0}', space=vmem, size = 0x1000, scoped, tag = 'output window, operand 0, single buffered']
    %7 = vsyncpa [#allocation3], 0
    %8 = vsyncpa [#allocation6], 0
    %9 = vsyncpa [#allocation4], 0
    // Predicated region
    $region2: #{_pe_add_call.1} parent=1 // pred_check
      _
    $region3: #{_pe_add_call.1} parent=1 // pred_check_branch
      %11 = sbr.rel (0) target = $region5
    $region4: #{_pe_add_call.1} parent=1 // pred_region
      %13 = vsyncadd [#allocation3], 0
      %s15 = sshll.u32 %s0, 4
      %s16 = int_to_ptr.hbm [resolvable:$true] %s15
      %s17 = sshll.u32 [#allocation2], 4
      %s18 = int_to_ptr.vmem [resolvable:$true] %s17
      %20 = dma.hbm_to_vmem [thread:$0]  %s16, 128, %s18, [#allocation3]
    $region5: #{_pe_add_call.1} parent=1 // pred_fallthru
      _
    // Predicated region
    $region6: #{_pe_add_call.1} parent=1 // pred_check
      _
    $region7: #{_pe_add_call.1} parent=1 // pred_check_branch
      %22 = sbr.rel (0) target = $region9
    $region8: #{_pe_add_call.1} parent=1 // pred_region
      %24 = vsyncadd [#allocation6], 0
      %s26 = sshll.u32 %s1, 4
      %s27 = int_to_ptr.hbm [resolvable:$true] %s26
      %s28 = sshll.u32 [#allocation5], 4
      %s29 = int_to_ptr.vmem [resolvable:$true] %s28
      %31 = dma.hbm_to_vmem [thread:$0]  %s27, 128, %s29, [#allocation6]
    $region9: #{_pe_add_call.1} parent=1 // pred_fallthru
      _
    // Predicated region
    $region10: #{_pe_add_call.1} parent=1 // pred_check
      _
    $region11: #{_pe_add_call.1} parent=1 // pred_check_branch
      %33 = sbr.rel (0) target = $region13
    $region12: #{_pe_add_call.1} parent=1 // pred_region
      %35 = dma.done [#allocation3], 128
    $region13: #{_pe_add_call.1} parent=1 // pred_fallthru
      _
    // Predicated region
    $region14: #{_pe_add_call.1} parent=1 // pred_check
      _
    $region15: #{_pe_add_call.1} parent=1 // pred_check_branch
      %37 = sbr.rel (0) target = $region17
    $region16: #{_pe_add_call.1} parent=1 // pred_region
      %39 = dma.done [#allocation6], 128
    $region17: #{_pe_add_call.1} parent=1 // pred_fallthru
      _
    %v40 = vld [vmem:[#allocation5] sm:$0xff]
    %42 = vrot.lane.b32.xlu0 %v40, 32
    %v43 = vpop.permute.xlu0 %42
    %vm45 = vcmask 261120
    %v46 = vsel %vm45, %v40, %v43
    %v47 = vld [vmem:[#allocation2] sm:$0xff]
    %v48 = vadd.f32 %v47, %v46
    %vm49 = vcmask 523264
    %50 = vst.msk [vmem:[#allocation7] sm:$0xff] %vm49, %v48
    // Predicated region
    $region18: #{_pe_add_call.1} parent=1 // pred_check
      _
    $region19: #{_pe_add_call.1} parent=1 // pred_check_branch
      %52 = sbr.rel (0) target = $region21
    $region20: #{_pe_add_call.1} parent=1 // pred_region
      %54 = vsyncadd [#allocation4], 0
      %s56 = sshll.u32 [#allocation7], 4
      %s57 = int_to_ptr.vmem [resolvable:$true] %s56
      %s58 = sshll.u32 %s2, 4
      %s59 = int_to_ptr.hbm [resolvable:$true] %s58
      %61 = dma.vmem_to_hbm [thread:$0]  %s57, 128, %s59, [#allocation4]
    $region21: #{_pe_add_call.1} parent=1 // pred_fallthru
      _
    // Predicated region
    $region22: #{_pe_add_call.1} parent=1 // pred_check
      _
    $region23: #{_pe_add_call.1} parent=1 // pred_check_branch
      %63 = sbr.rel (0) target = $region25
    $region24: #{_pe_add_call.1} parent=1 // pred_region
      %65 = dma.done [#allocation4], 128
    $region25: #{_pe_add_call.1} parent=1 // pred_fallthru
      _
    %66 = vsyncpa [#allocation3], 1
    %67 = vsyncpa [#allocation6], 1
    %68 = vsyncpa [#allocation4], 1

</llo_original>
